<compile_context>
chip_gen: v7x
topology: tpu7x:2x2x1
jax: 0.10.0
libtpu: 0.0.40
codegen_flags: <defaults>
</compile_context>

<pallas_src>
import functools

import jax
import jax.numpy as jnp
from jax import lax
from jax.experimental import pallas as pl
from jax.experimental.pallas import tpu as pltpu


def _round_up(x, m):
    return ((x + m - 1) // m) * m


def _leaky_relu(x, slope=0.01):
    # 2 VPU ops (mul + max) instead of cmp + mul + select.
    return jnp.maximum(x, slope * x)


def dendritic_neuron_kernel(x_ref, wd_ref, ws_ref, out_ref, act_ref, *, b_true, tb):
    b = pl.program_id(0)

    # --- row norms in f32 (F.normalize(x, p=2, dim=1)) ------------------------------
    x = x_ref[...].astype(jnp.float32)                       # (tb, D)
    sumsq = jnp.sum(x * x, axis=1, keepdims=True)            # (tb, 1)
    inv_norm = lax.rsqrt(jnp.maximum(sumsq, 1e-24))          # EUP; == 1/max(||x||,1e-12)

    # --- dendritic matmul on the MXU: bf16 operands, f32 accumulation ---------------
    # Scale by 1/||x|| AFTER the matmul so the MXU push doesn't wait on the norm chain
    # (leaky_relu(a*x) == a*leaky_relu(x) for a > 0, so semantics are unchanged).
    pre = jnp.dot(x.astype(jnp.bfloat16), wd_ref[...],
                  preferred_element_type=jnp.float32)        # (tb, n_pad) f32
    d = _leaky_relu(pre * inv_norm)

    # --- mask ragged / out-of-bounds batch rows (trace-time gated) -------------------
    if b_true % tb != 0:
        row = b * tb + lax.broadcasted_iota(jnp.int32, (d.shape[0], 1), 0)
        d = jnp.where(row < b_true, d, 0.0)                  # kills garbage/NaN rows

    # Dropout(0.2): identity in eval mode.

    # --- per-tile activity partial sum (EMA combine happens in the wrapper) ----------
    act_ref[...] = jnp.sum(d, axis=0, keepdims=True)[None]   # (1, 1, n_pad)

    # --- soma reduction as a bf16 matmul -> lane-dense (1, tb) output ----------------
    soma = lax.dot_general(ws_ref[...], d.astype(jnp.bfloat16),
                           dimension_numbers=(((1,), (1,)), ((), ())),
                           preferred_element_type=jnp.float32)   # (1, tb)
    out_ref[...] = _leaky_relu(soma).astype(out_ref.dtype)


def _vmem_budget_bytes():
    try:
        kind = jax.devices()[0].device_kind.lower()
    except Exception:
        kind = ""
    if "v7" in kind:
        return 48 * 1024 * 1024          # 64 MiB physical VMEM per TensorCore
    if any(k in kind for k in ("v4", "v5", "v6")):
        return 96 * 1024 * 1024          # 128 MiB physical VMEM
    return 32 * 1024 * 1024              # conservative fallback


def _pick_batch_tile(B, D, n_pad, vmem_budget):
    # Per-row VMEM cost: x tile lane-padded to 128 lanes and double-buffered,
    # plus the f32 d intermediate, its bf16 copy + relayout for the soma dot,
    # plus the (double-buffered) soma output row.
    bytes_per_row = (2 * _round_up(D, 128) * 4      # x tile, 2 buffers
                     + n_pad * 4                     # d (f32)
                     + 2 * n_pad * 2                 # d bf16 + transposed copy
                     + 16)                           # soma out, 2 buffers
    cap = int(vmem_budget * 0.55) // bytes_per_row
    cap = max(128, (cap // 128) * 128)
    return int(min(cap, _round_up(B, 128), 32768))


def prepare_dendritic_params(dendritic_weights, soma_weights):
    """One-time (hoisted) weight prep: pad the dendrite axis to a lane-dense multiple
    of 128, pre-transpose dendritic weights to (D, N_pad), cast both to bf16."""
    N, D = dendritic_weights.shape
    n_pad = _round_up(max(N, 128), 128)
    wd_dn = jnp.pad(dendritic_weights, ((0, n_pad - N), (0, 0))).T.astype(jnp.bfloat16)
    ws_row = jnp.pad(soma_weights, (0, n_pad - N)).reshape(1, n_pad).astype(jnp.bfloat16)
    return wd_dn, ws_row


def dendritic_neuron_forward(x, wd_dn, ws_row, dendrite_activity, *, batch_tile=None):
    """x: (B, D) f32; wd_dn: (D, N_pad) bf16; ws_row: (1, N_pad) bf16;
    dendrite_activity: (N,) f32.  Returns (out (B,), new_activity (N,))."""
    B, D = x.shape
    n_pad = ws_row.shape[1]
    N = dendrite_activity.shape[0]

    vmem_budget = _vmem_budget_bytes()
    tb = batch_tile if batch_tile is not None else _pick_batch_tile(B, D, n_pad, vmem_budget)
    assert tb % 128 == 0, "batch tile must be a lane-dense multiple of 128"
    num_tiles = (B + tb - 1) // tb

    kernel = functools.partial(dendritic_neuron_kernel, b_true=B, tb=tb)

    out2d, act_part = pl.pallas_call(
        kernel,
        grid=(num_tiles,),
        in_specs=[
            pl.BlockSpec((tb, D), lambda b: (b, 0)),            # x tiles (double-buffered)
            # TODO(synk): pl.Buffered(1) pipeline_mode for these constant-index inputs.
            pl.BlockSpec((D, n_pad), lambda b: (0, 0)),          # dendritic weights (resident)
            pl.BlockSpec((1, n_pad), lambda b: (0, 0)),          # soma weights (resident)
        ],
        out_specs=(
            pl.BlockSpec((1, tb), lambda b: (0, b)),             # lane-dense soma output
            pl.BlockSpec((1, 1, n_pad), lambda b: (b, 0, 0)),    # per-tile activity partials
        ),
        out_shape=(
            jax.ShapeDtypeStruct((1, num_tiles * tb), jnp.float32),
            jax.ShapeDtypeStruct((num_tiles, 1, n_pad), jnp.float32),
        ),
        compiler_params=pltpu.CompilerParams(
            dimension_semantics=("parallel",),                   # no cross-iter state
            vmem_limit_bytes=vmem_budget,
        ),
    )(x, wd_dn, ws_row)

    # Tiny (num_tiles x N) combine in the wrapper keeps the kernel grid 'parallel'.
    mean_abs = jnp.abs(jnp.sum(act_part[:, 0, :N], axis=0) / B)
    new_activity = 0.9 * dendrite_activity + 0.1 * mean_abs
    return out2d[0, :B], new_activity


def _reference(x, wd, ws, act):
    # Pure-JAX f32 reference with the PyTorch module's semantics (eval mode).
    xn = x / jnp.maximum(jnp.linalg.norm(x, axis=1, keepdims=True), 1e-12)
    pre = xn @ wd.T
    d = jnp.where(pre >= 0, pre, 0.01 * pre)
    new_act = 0.9 * act + 0.1 * jnp.abs(jnp.mean(d, axis=0))
    s = d @ ws
    out = jnp.where(s >= 0, s, 0.01 * s)
    return out, new_act


if __name__ == "__main__":
    key = jax.random.PRNGKey(0)
    k_x, k_wd, k_ws, k_x2 = jax.random.split(key, 4)

    D, N = 32, 16          # input_size, num_dendrites

    dendritic_weights = jax.random.normal(k_wd, (N, D), dtype=jnp.float32) * 0.1
    soma_weights = jax.random.normal(k_ws, (N,), dtype=jnp.float32) * 0.1
    dendrite_activity = jnp.zeros((N,), dtype=jnp.float32)

    # Hoisted, one-time weight prep (pad + transpose + bf16 cast).
    wd_dn, ws_row = prepare_dendritic_params(dendritic_weights, soma_weights)

    # Case 1: tiny batch -> single grid step, partial block masked in-kernel.
    x1 = jax.random.normal(k_x, (8, D), dtype=jnp.float32)
    out1, act1 = dendritic_neuron_forward(x1, wd_dn, ws_row, dendrite_activity)
    jax.block_until_ready((out1, act1))
    out1_ref, act1_ref = _reference(x1, dendritic_weights, soma_weights, dendrite_activity)
    assert out1.shape == (8,) and act1.shape == (N,)
    # bf16 MXU feed -> loosened tolerance vs the f32 reference (documented choice).
    assert jnp.allclose(out1, out1_ref, atol=5e-3), "case1: output mismatch"
    assert jnp.allclose(act1, act1_ref, atol=2e-3), "case1: activity mismatch"

    # Case 2: B not a multiple of the tile -> grid of 3, ragged last tile masked,
    # per-tile activity partials combined in the wrapper (no x padding anywhere).
    x2 = jax.random.normal(k_x2, (300, D), dtype=jnp.float32)
    out2, act2 = dendritic_neuron_forward(x2, wd_dn, ws_row, dendrite_activity,
                                          batch_tile=128)
    jax.block_until_ready((out2, act2))
    out2_ref, act2_ref = _reference(x2, dendritic_weights, soma_weights, dendrite_activity)
    assert out2.shape == (300,) and act2.shape == (N,)
    assert jnp.allclose(out2, out2_ref, atol=5e-3), "case2: output mismatch"
    assert jnp.allclose(act2, act2_ref, atol=2e-3), "case2: activity mismatch"

    print("KERNEL_OK")
</pallas_src>

<mosaic_0001>
module attributes {stable_mosaic.version = 11 : i64} {
  func.func @dendritic_neuron_kernel(%arg0: i32, %arg1: memref<128x32xf32, #tpu.memory_space<vmem>>, %arg2: memref<32x128xbf16, #tpu.memory_space<vmem>>, %arg3: memref<1x128xbf16, #tpu.memory_space<vmem>>, %arg4: memref<1x128xf32, #tpu.memory_space<vmem>>, %arg5: memref<1x1x128xf32, #tpu.memory_space<vmem>>) attributes {dimension_semantics = [#tpu.dimension_semantics<parallel>], iteration_bounds = array<i64: 1>, scalar_prefetch = 0 : i64, scratch_operands = 0 : i64, tpu.core_type = #tpu.core_type<tc>, window_params = [{transform_indices = @transform_0, window_bounds = array<i64: 128, 32>}, {pipeline_mode = #tpu.pipeline_mode<synchronous>, transform_indices = @transform_1, window_bounds = array<i64: 32, 128>}, {pipeline_mode = #tpu.pipeline_mode<synchronous>, transform_indices = @transform_2, window_bounds = array<i64: 1, 128>}, {transform_indices = @transform_3, window_bounds = array<i64: 1, 128>}, {transform_indices = @transform_4, window_bounds = array<i64: 1, 1, 128>}]} {
    %c0 = arith.constant 0 : index
    %c0_0 = arith.constant 0 : index
    %0 = vector.load %arg1[%c0, %c0_0] : memref<128x32xf32, #tpu.memory_space<vmem>>, vector<128x32xf32>
    %1 = arith.mulf %0, %0 : vector<128x32xf32>
    %cst = arith.constant dense<0.000000e+00> : vector<128xf32>
    %2 = vector.multi_reduction <add>, %1, %cst [1] : vector<128x32xf32> to vector<128xf32>
    %3 = vector.shape_cast %2 : vector<128xf32> to vector<128x1xf32>
    %cst_1 = arith.constant 1.000000e-24 : f32
    %4 = vector.broadcast %cst_1 : f32 to vector<128x1xf32>
    %5 = arith.maximumf %3, %4 : vector<128x1xf32>
    %6 = math.rsqrt %5 : vector<128x1xf32>
    %7 = arith.truncf %0 : vector<128x32xf32> to vector<128x32xbf16>
    %c0_2 = arith.constant 0 : index
    %c0_3 = arith.constant 0 : index
    %8 = vector.load %arg2[%c0_2, %c0_3] : memref<32x128xbf16, #tpu.memory_space<vmem>>, vector<32x128xbf16>
    %cst_4 = arith.constant dense<0.000000e+00> : vector<128x128xf32>
    %9 = tpu.matmul %7, %8, %cst_4 {dimension_numbers = #tpu.dot_dimension_numbers<[1], [0], [0], [1], [0, 0, 1, 1], [], []>} : vector<128x32xbf16>, vector<32x128xbf16>, vector<128x128xf32> -> vector<128x128xf32>
    %10 = vector.broadcast %6 : vector<128x1xf32> to vector<128x128xf32>
    %11 = arith.mulf %9, %10 : vector<128x128xf32>
    %cst_5 = arith.constant 0.00999999977 : f32
    %12 = vector.broadcast %cst_5 : f32 to vector<128x128xf32>
    %13 = arith.mulf %12, %11 : vector<128x128xf32>
    %14 = arith.maximumf %11, %13 : vector<128x128xf32>
    %c128_i32 = arith.constant 128 : i32
    %15 = arith.muli %arg0, %c128_i32 : i32
    %16 = tpu.iota {dimensions = array<i32: 0>} : vector<128x1xi32>
    %17 = vector.broadcast %15 : i32 to vector<128x1xi32>
    %18 = arith.addi %17, %16 : vector<128x1xi32>
    %c8_i32 = arith.constant 8 : i32
    %19 = vector.broadcast %c8_i32 : i32 to vector<128x1xi32>
    %20 = arith.cmpi slt, %18, %19 : vector<128x1xi32>
    %cst_6 = arith.constant 0.000000e+00 : f32
    %21 = vector.shape_cast %20 : vector<128x1xi1> to vector<128x1xi1>
    %22 = vector.broadcast %21 : vector<128x1xi1> to vector<128x128xi1>
    %23 = vector.broadcast %cst_6 : f32 to vector<128x128xf32>
    %24 = arith.select %22, %14, %23 : vector<128x128xi1>, vector<128x128xf32>
    %cst_7 = arith.constant dense<0.000000e+00> : vector<128xf32>
    %25 = vector.multi_reduction <add>, %24, %cst_7 [0] : vector<128x128xf32> to vector<128xf32>
    %26 = vector.shape_cast %25 : vector<128xf32> to vector<1x128xf32>
    %27 = vector.shape_cast %26 : vector<1x128xf32> to vector<1x1x128xf32>
    %c0_8 = arith.constant 0 : index
    %c0_9 = arith.constant 0 : index
    %c0_10 = arith.constant 0 : index
    %28 = vector.load %arg5[%c0_8, %c0_9, %c0_10] : memref<1x1x128xf32, #tpu.memory_space<vmem>>, vector<1x1x128xf32>
    tpu.vector_store %arg5[%c0_8, %c0_9, %c0_10], %27 {strides = array<i32>} : memref<1x1x128xf32, #tpu.memory_space<vmem>>, vector<1x1x128xf32>,
    %c0_11 = arith.constant 0 : index
    %c0_12 = arith.constant 0 : index
    %29 = vector.load %arg3[%c0_11, %c0_12] : memref<1x128xbf16, #tpu.memory_space<vmem>>, vector<1x128xbf16>
    %30 = arith.truncf %24 : vector<128x128xf32> to vector<128x128xbf16>
    %cst_13 = arith.constant dense<0.000000e+00> : vector<1x128xf32>
    %31 = tpu.matmul %29, %30, %cst_13 {dimension_numbers = #tpu.dot_dimension_numbers<[1], [1], [0], [0], [0, 0, 1, 0], [], []>} : vector<1x128xbf16>, vector<128x128xbf16>, vector<1x128xf32> -> vector<1x128xf32>
    %cst_14 = arith.constant 0.00999999977 : f32
    %32 = vector.broadcast %cst_14 : f32 to vector<1x128xf32>
    %33 = arith.mulf %32, %31 : vector<1x128xf32>
    %34 = arith.maximumf %31, %33 : vector<1x128xf32>
    %c0_15 = arith.constant 0 : index
    %c0_16 = arith.constant 0 : index
    %35 = vector.load %arg4[%c0_15, %c0_16] : memref<1x128xf32, #tpu.memory_space<vmem>>, vector<1x128xf32>
    tpu.vector_store %arg4[%c0_15, %c0_16], %34 {strides = array<i32>} : memref<1x128xf32, #tpu.memory_space<vmem>>, vector<1x128xf32>,
    return
  }
  func.func @transform_0(%arg0: i32) -> (i32, i32) {
    %c0_i32 = arith.constant 0 : i32
    %c0_i32_0 = arith.constant 0 : i32
    return %arg0, %c0_i32 : i32, i32
  }
  func.func @transform_1(%arg0: i32) -> (i32, i32) {
    %c0_i32 = arith.constant 0 : i32
    %c0_i32_0 = arith.constant 0 : i32
    %c0_i32_1 = arith.constant 0 : i32
    return %c0_i32, %c0_i32_0 : i32, i32
  }
  func.func @transform_2(%arg0: i32) -> (i32, i32) {
    %c0_i32 = arith.constant 0 : i32
    %c0_i32_0 = arith.constant 0 : i32
    %c0_i32_1 = arith.constant 0 : i32
    return %c0_i32, %c0_i32_0 : i32, i32
  }
  func.func @transform_3(%arg0: i32) -> (i32, i32) {
    %c0_i32 = arith.constant 0 : i32
    %c0_i32_0 = arith.constant 0 : i32
    return %c0_i32, %arg0 : i32, i32
  }
  func.func @transform_4(%arg0: i32) -> (i32, i32, i32) {
    %c0_i32 = arith.constant 0 : i32
    %c0_i32_0 = arith.constant 0 : i32
    %c0_i32_1 = arith.constant 0 : i32
    return %arg0, %c0_i32, %c0_i32_0 : i32, i32, i32
  }
}

</mosaic_0001>

<llo_original>
// kernel: tpu_custom_call.1
$region0: #{tpu_custom_call.1}
  #allocation0 [shape = 'u32[]', space=smem, size = 0x4, offset = 0x4, fixed_abs, tag = 'smem constant byte address 0x4 - core index']
  #allocation1 [shape = 'u32[144,128]{1,0:T(1,128)}', space=vmem, size = 0x12000, scoped, tag = 'internal scratch']
  %s0 = inlined_call_operand.hbm [shape: f32[8,32], index: 0, kind: input, shape index: {}]
  %s1 = inlined_call_operand.hbm [shape: bf16[32,128], index: 1, kind: input, shape index: {}]
  %s2 = inlined_call_operand.vmem [shape: bf16[1,128], index: 2, kind: input, shape index: {}]
  %s3 = inlined_call_operand.hbm [shape: f32[1,128], index: 3, kind: output, shape index: {0}]
  %s4 = inlined_call_operand.hbm [shape: f32[1,1,128], index: 4, kind: output, shape index: {1}]
  %5 = xla_tuple %s3, %s4
  %s6 = sld [smem:[#allocation0]]
  $region38: #{tpu_custom_call.1} parent=0
    _
  %s8 = ssub.s32 1, %s6
  %s9 = scalar_select 0, %s8, %s6
  $region1: #{tpu_custom_call.1} parent=0
    #allocation2 [shape = 'u8[65536]{0}', space=vmem, size = 0x10000, scoped, tag = 'input window, operand 0, single buffered']
    #allocation3 [shape = 's32[1]{0}', space=sflag, size = 0x4, scoped, tag = 'scoped memory for tpu_custom_call.1']
    #allocation4 [shape = 's32[1]{0}', space=sflag, size = 0x4, scoped, tag = 'scoped memory for tpu_custom_call.1']
    #allocation5 [shape = 'u8[8192]{0}', space=vmem, size = 0x2000, scoped, tag = 'input window, operand 1, single buffered']
    #allocation6 [shape = 's32[1]{0}', space=sflag, size = 0x4, scoped, tag = 'scoped memory for tpu_custom_call.1']
    #allocation7 [shape = 'u8[512]{0}', space=vmem, size = 0x400, scoped, tag = 'output window, operand 0, single buffered']
    #allocation8 [shape = 'u8[512]{0}', space=vmem, size = 0x400, scoped, tag = 'output window, operand 1, single buffered']
    #allocation9 [shape = 's32[1]{0}', space=sflag, size = 0x4, scoped, tag = 'scoped memory for tpu_custom_call.1']
    %10 = vsyncpa [#allocation3], 0
    %11 = vsyncpa [#allocation6], 0
    %12 = vsyncpa [#allocation4], 0
    %13 = vsyncpa [#allocation9], 0
    // Predicated region
    $region2: #{tpu_custom_call.1} parent=1 // pred_check
      _
    $region3: #{tpu_custom_call.1} parent=1 // pred_check_branch
      %15 = sbr.rel (0) target = $region5
    $region4: #{tpu_custom_call.1} parent=1 // pred_region
      %s17 = ssub.s32 2048, 128
      %18 = vsyncadd [#allocation3], %s17
      %s19 = sshll.u32 [#allocation2], 4
      %s20 = int_to_ptr.vmem [resolvable:$true] %s19
      %25 = dma.hbm_to_vmem [thread:$0]  %s0, 128, %s20, [#allocation3], 128, 128, 8
    $region5: #{tpu_custom_call.1} parent=1 // pred_fallthru
      _
    // Predicated region
    $region6: #{tpu_custom_call.1} parent=1 // pred_check
      _
    $region7: #{tpu_custom_call.1} parent=1 // pred_check_branch
      %27 = sbr.rel (0) target = $region9
    $region8: #{tpu_custom_call.1} parent=1 // pred_region
      %s29 = ssub.s32 256, 256
      %30 = vsyncadd [#allocation6], %s29
      %s31 = sshll.u32 [#allocation5], 4
      %s32 = int_to_ptr.vmem [resolvable:$true] %s31
      %37 = dma.hbm_to_vmem [thread:$0]  %s1, 256, %s32, [#allocation6], 64, 64, 4
    $region9: #{tpu_custom_call.1} parent=1 // pred_fallthru
      _
    // Predicated region
    $region10: #{tpu_custom_call.1} parent=1 // pred_check
      _
    $region11: #{tpu_custom_call.1} parent=1 // pred_check_branch
      %39 = sbr.rel (0) target = $region13
    $region12: #{tpu_custom_call.1} parent=1 // pred_region
      _
    $region13: #{tpu_custom_call.1} parent=1 // pred_fallthru
      _
    // Predicated region
    $region14: #{tpu_custom_call.1} parent=1 // pred_check
      _
    $region15: #{tpu_custom_call.1} parent=1 // pred_check_branch
      %41 = sbr.rel (0) target = $region17
    $region16: #{tpu_custom_call.1} parent=1 // pred_region
      %42 = dma.done [#allocation3], 2048
    $region17: #{tpu_custom_call.1} parent=1 // pred_fallthru
      _
    // Predicated region
    $region18: #{tpu_custom_call.1} parent=1 // pred_check
      _
    $region19: #{tpu_custom_call.1} parent=1 // pred_check_branch
      %44 = sbr.rel (0) target = $region21
    $region20: #{tpu_custom_call.1} parent=1 // pred_region
      %45 = dma.done [#allocation6], 256
    $region21: #{tpu_custom_call.1} parent=1 // pred_fallthru
      _
    %v47 = vld [vmem:[#allocation2] sm:$0xff]
    %v48 = vld [vmem:[#allocation2 + $0x8] sm:$0xff]
    %v49 = vld [vmem:[#allocation2 + $0x10] sm:$0xff]
    %v50 = vld [vmem:[#allocation2 + $0x18] sm:$0xff]
    %v51 = vld [vmem:[#allocation2 + $0x20] sm:$0xff]
    %v52 = vld [vmem:[#allocation2 + $0x28] sm:$0xff]
    %v53 = vld [vmem:[#allocation2 + $0x30] sm:$0xff]
    %v54 = vld [vmem:[#allocation2 + $0x38] sm:$0xff]
    %v55 = vld [vmem:[#allocation2 + $0x40] sm:$0xff]
    %v56 = vld [vmem:[#allocation2 + $0x48] sm:$0xff]
    %v57 = vld [vmem:[#allocation2 + $0x50] sm:$0xff]
    %v58 = vld [vmem:[#allocation2 + $0x58] sm:$0xff]
    %v59 = vld [vmem:[#allocation2 + $0x60] sm:$0xff]
    %v60 = vld [vmem:[#allocation2 + $0x68] sm:$0xff]
    %v61 = vld [vmem:[#allocation2 + $0x70] sm:$0xff]
    %v62 = vld [vmem:[#allocation2 + $0x78] sm:$0xff]
    %v63 = vmul.f32 %v47, %v47
    %v64 = vmul.f32 %v48, %v48
    %v65 = vmul.f32 %v49, %v49
    %v66 = vmul.f32 %v50, %v50
    %v67 = vmul.f32 %v51, %v51
    %v68 = vmul.f32 %v52, %v52
    %v69 = vmul.f32 %v53, %v53
    %v70 = vmul.f32 %v54, %v54
    %v71 = vmul.f32 %v55, %v55
    %v72 = vmul.f32 %v56, %v56
    %v73 = vmul.f32 %v57, %v57
    %v74 = vmul.f32 %v58, %v58
    %v75 = vmul.f32 %v59, %v59
    %v76 = vmul.f32 %v60, %v60
    %v77 = vmul.f32 %v61, %v61
    %v78 = vmul.f32 %v62, %v62
    %vm79 = vcmask 261120
    %v80 = vsel %vm79, %v63, 0.0
    %81 = vadd.xlane.f32.xlu0 %v80
    %v82 = vpop.xlane.xlu0 %81
    %v83 = vsel %vm79, %v64, 0.0
    %84 = vadd.xlane.f32.xlu0 %v83
    %v85 = vpop.xlane.xlu0 %84
    %v86 = vsel %vm79, %v65, 0.0
    %87 = vadd.xlane.f32.xlu0 %v86
    %v88 = vpop.xlane.xlu0 %87
    %v89 = vsel %vm79, %v66, 0.0
    %90 = vadd.xlane.f32.xlu0 %v89
    %v91 = vpop.xlane.xlu0 %90
    %v92 = vsel %vm79, %v67, 0.0
    %93 = vadd.xlane.f32.xlu0 %v92
    %v94 = vpop.xlane.xlu0 %93
    %v95 = vsel %vm79, %v68, 0.0
    %96 = vadd.xlane.f32.xlu0 %v95
    %v97 = vpop.xlane.xlu0 %96
    %v98 = vsel %vm79, %v69, 0.0
    %99 = vadd.xlane.f32.xlu0 %v98
    %v100 = vpop.xlane.xlu0 %99
    %v101 = vsel %vm79, %v70, 0.0
    %102 = vadd.xlane.f32.xlu0 %v101
    %v103 = vpop.xlane.xlu0 %102
    %v104 = vsel %vm79, %v71, 0.0
    %105 = vadd.xlane.f32.xlu0 %v104
    %v106 = vpop.xlane.xlu0 %105
    %v107 = vsel %vm79, %v72, 0.0
    %108 = vadd.xlane.f32.xlu0 %v107
    %v109 = vpop.xlane.xlu0 %108
    %v110 = vsel %vm79, %v73, 0.0
    %111 = vadd.xlane.f32.xlu0 %v110
    %v112 = vpop.xlane.xlu0 %111
    %v113 = vsel %vm79, %v74, 0.0
    %114 = vadd.xlane.f32.xlu0 %v113
    %v115 = vpop.xlane.xlu0 %114
    %v116 = vsel %vm79, %v75, 0.0
    %117 = vadd.xlane.f32.xlu0 %v116
    %v118 = vpop.xlane.xlu0 %117
    %v119 = vsel %vm79, %v76, 0.0
    %120 = vadd.xlane.f32.xlu0 %v119
    %v121 = vpop.xlane.xlu0 %120
    %v122 = vsel %vm79, %v77, 0.0
    %123 = vadd.xlane.f32.xlu0 %v122
    %v124 = vpop.xlane.xlu0 %123
    %v125 = vsel %vm79, %v78, 0.0
    %126 = vadd.xlane.f32.xlu0 %v125
    %v127 = vpop.xlane.xlu0 %126
    %v128 = vmax.f32 %v82, 1e-24
    %v129 = vmax.f32 %v85, 1e-24
    %v130 = vmax.f32 %v88, 1e-24
    %v131 = vmax.f32 %v91, 1e-24
    %v132 = vmax.f32 %v94, 1e-24
    %v133 = vmax.f32 %v97, 1e-24
    %v134 = vmax.f32 %v100, 1e-24
    %v135 = vmax.f32 %v103, 1e-24
    %v136 = vmax.f32 %v106, 1e-24
    %v137 = vmax.f32 %v109, 1e-24
    %v138 = vmax.f32 %v112, 1e-24
    %v139 = vmax.f32 %v115, 1e-24
    %v140 = vmax.f32 %v118, 1e-24
    %v141 = vmax.f32 %v121, 1e-24
    %v142 = vmax.f32 %v124, 1e-24
    %v143 = vmax.f32 %v127, 1e-24
    %v144 = vrsqrt.pop %v128
    %v145 = vrsqrt.pop %v129
    %v146 = vrsqrt.pop %v130
    %v147 = vrsqrt.pop %v131
    %v148 = vrsqrt.pop %v132
    %v149 = vrsqrt.pop %v133
    %v150 = vrsqrt.pop %v134
    %v151 = vrsqrt.pop %v135
    %v152 = vrsqrt.pop %v136
    %v153 = vrsqrt.pop %v137
    %v154 = vrsqrt.pop %v138
    %v155 = vrsqrt.pop %v139
    %v156 = vrsqrt.pop %v140
    %v157 = vrsqrt.pop %v141
    %v158 = vrsqrt.pop %v142
    %v159 = vrsqrt.pop %v143
    %v160 = vpack.c.bf16 %v48, %v47
    %v161 = vpack.c.bf16 %v50, %v49
    %v162 = vpack.c.bf16 %v52, %v51
    %v163 = vpack.c.bf16 %v54, %v53
    %v164 = vpack.c.bf16 %v56, %v55
    %v165 = vpack.c.bf16 %v58, %v57
    %v166 = vpack.c.bf16 %v60, %v59
    %v167 = vpack.c.bf16 %v62, %v61
    %v168 = vld [vmem:[#allocation5] sm:$0xf]
    %v169 = vld [vmem:[#allocation5 + $0x4] sm:$0xf]
    %v170 = vld [vmem:[#allocation5 + $0x8] sm:$0xf]
    %v171 = vld [vmem:[#allocation5 + $0xc] sm:$0xf]
    %v176 = vunpack.c.l.b16 %v168
    %v177 = vunpack.c.l.b16 %v169
    %v178 = vunpack.c.l.b16 %v170
    %v179 = vunpack.c.l.b16 %v171
    %v180 = vpack.c.b16 %v177, %v176
    %v181 = vpack.c.b16 %v179, %v178
    %v185 = vsel %vm79, %v160, 0
    %v188 = vsel %vm79, %v161, 0
    %v191 = vsel %vm79, %v162, 0
    %v194 = vsel %vm79, %v163, 0
    %v197 = vsel %vm79, %v164, 0
    %v200 = vsel %vm79, %v165, 0
    %v203 = vsel %vm79, %v166, 0
    %v206 = vsel %vm79, %v167, 0
    %208 = vmatprep.subr.bf16.mxu0 0
    %209 = vmatpush1.bf16.msra.mxu0 %v180
    %210 = vmatprep.subr.bf16.mxu0 0
    %211 = vmatpush1.bf16.msra.mxu0 %v181
    %212 = vmatprep.subr.bf16.mxu0 0
    %213 = vmatpush1.bf16.msra.mxu0 0
    %214 = vmatprep.subr.bf16.mxu0 0
    %215 = vmatpush1.bf16.msra.mxu0 0
    %216 = vmatprep.subr.bf16.mxu0 0
    %217 = vmatpush1.bf16.msra.mxu0 0
    %218 = vmatprep.subr.bf16.mxu0 0
    %219 = vmatpush1.bf16.msra.mxu0 0
    %220 = vmatprep.subr.bf16.mxu0 0
    %221 = vmatpush1.bf16.msra.mxu0 0
    %222 = vmatprep.subr.bf16.mxu0 0
    %223 = vmatpush1.bf16.msra.mxu0 0
    %224 = vmatprep.subr.bf16.mxu0 0
    %225 = vmatpush1.bf16.msra.mxu0 0
    %226 = vmatprep.subr.bf16.mxu0 0
    %227 = vmatpush1.bf16.msra.mxu0 0
    %228 = vmatprep.subr.bf16.mxu0 0
    %229 = vmatpush1.bf16.msra.mxu0 0
    %230 = vmatprep.subr.bf16.mxu0 0
    %231 = vmatpush1.bf16.msra.mxu0 0
    %232 = vmatprep.subr.bf16.mxu0 0
    %233 = vmatpush1.bf16.msra.mxu0 0
    %234 = vmatprep.subr.bf16.mxu0 0
    %235 = vmatpush1.bf16.msra.mxu0 0
    %236 = vmatprep.subr.bf16.mxu0 0
    %237 = vmatpush1.bf16.msra.mxu0 0
    %238 = vmatprep.subr.bf16.mxu0 0
    %239 = vmatpush1.bf16.msra.mxu0 0
    %240 = vmatprep.mubr.bf16.mxu0 0
    %241 = vmatmul.mubr.bf16.gmra.mrb[0].mxu0 %v185
    %v242 = vpop.f32.mrb[0].mxu0
    %v243 = vadd.f32 0.0, %v242
    %v244 = vpop.f32.mrb[0].mxu0
    %v245 = vpop.f32.mrb[0].mxu0
    %v246 = vadd.f32 0.0, %v245
    %v247 = vpop.f32.mrb[0].mxu0
    %248 = vmatprep.mubr.bf16.mxu0 0
    %249 = vmatmul.mubr.bf16.gmra.mrb[0].mxu0 %v188
    %v250 = vpop.f32.mrb[0].mxu0
    %v251 = vadd.f32 0.0, %v250
    %v252 = vpop.f32.mrb[0].mxu0
    %v253 = vpop.f32.mrb[0].mxu0
    %v254 = vadd.f32 0.0, %v253
    %v255 = vpop.f32.mrb[0].mxu0
    %256 = vmatprep.mubr.bf16.mxu0 0
    %257 = vmatmul.mubr.bf16.gmra.mrb[0].mxu0 %v191
    %v258 = vpop.f32.mrb[0].mxu0
    %v259 = vadd.f32 0.0, %v258
    %v260 = vpop.f32.mrb[0].mxu0
    %v261 = vpop.f32.mrb[0].mxu0
    %v262 = vadd.f32 0.0, %v261
    %v263 = vpop.f32.mrb[0].mxu0
    %264 = vmatprep.mubr.bf16.mxu0 0
    %265 = vmatmul.mubr.bf16.gmra.mrb[0].mxu0 %v194
    %v266 = vpop.f32.mrb[0].mxu0
    %v267 = vadd.f32 0.0, %v266
    %v268 = vpop.f32.mrb[0].mxu0
    %v269 = vpop.f32.mrb[0].mxu0
    %v270 = vadd.f32 0.0, %v269
    %v271 = vpop.f32.mrb[0].mxu0
    %272 = vmatprep.mubr.bf16.mxu0 0
    %273 = vmatmul.mubr.bf16.gmra.mrb[0].mxu0 %v197
    %v274 = vpop.f32.mrb[0].mxu0
    %v275 = vadd.f32 0.0, %v274
    %v276 = vpop.f32.mrb[0].mxu0
    %v277 = vpop.f32.mrb[0].mxu0
    %v278 = vadd.f32 0.0, %v277
    %v279 = vpop.f32.mrb[0].mxu0
    %280 = vmatprep.mubr.bf16.mxu0 0
    %281 = vmatmul.mubr.bf16.gmra.mrb[0].mxu0 %v200
    %v282 = vpop.f32.mrb[0].mxu0
    %v283 = vadd.f32 0.0, %v282
    %v284 = vpop.f32.mrb[0].mxu0
    %v285 = vpop.f32.mrb[0].mxu0
    %v286 = vadd.f32 0.0, %v285
    %v287 = vpop.f32.mrb[0].mxu0
    %288 = vmatprep.mubr.bf16.mxu0 0
    %289 = vmatmul.mubr.bf16.gmra.mrb[0].mxu0 %v203
    %v290 = vpop.f32.mrb[0].mxu0
    %v291 = vadd.f32 0.0, %v290
    %v292 = vpop.f32.mrb[0].mxu0
    %v293 = vpop.f32.mrb[0].mxu0
    %v294 = vadd.f32 0.0, %v293
    %v295 = vpop.f32.mrb[0].mxu0
    %296 = vmatprep.mubr.bf16.mxu0 0
    %297 = vmatmul.mubr.bf16.gmra.mrb[0].mxu0 %v206
    %v298 = vpop.f32.mrb[0].mxu0
    %v299 = vadd.f32 0.0, %v298
    %v300 = vpop.f32.mrb[0].mxu0
    %v301 = vpop.f32.mrb[0].mxu0
    %v302 = vadd.f32 0.0, %v301
    %v303 = vpop.f32.mrb[0].mxu0
    %304 = vdwg.mxu0
    %v305 = vmul.f32 %v243, %v144
    %v306 = vmul.f32 %v246, %v145
    %v307 = vmul.f32 %v251, %v146
    %v308 = vmul.f32 %v254, %v147
    %v309 = vmul.f32 %v259, %v148
    %v310 = vmul.f32 %v262, %v149
    %v311 = vmul.f32 %v267, %v150
    %v312 = vmul.f32 %v270, %v151
    %v313 = vmul.f32 %v275, %v152
    %v314 = vmul.f32 %v278, %v153
    %v315 = vmul.f32 %v283, %v154
    %v316 = vmul.f32 %v286, %v155
    %v317 = vmul.f32 %v291, %v156
    %v318 = vmul.f32 %v294, %v157
    %v319 = vmul.f32 %v299, %v158
    %v320 = vmul.f32 %v302, %v159
    %v321 = vmul.f32 %v305, 0.01
    %v322 = vmul.f32 %v306, 0.01
    %v323 = vmul.f32 %v307, 0.01
    %v324 = vmul.f32 %v308, 0.01
    %v325 = vmul.f32 %v309, 0.01
    %v326 = vmul.f32 %v310, 0.01
    %v327 = vmul.f32 %v311, 0.01
    %v328 = vmul.f32 %v312, 0.01
    %v329 = vmul.f32 %v313, 0.01
    %v330 = vmul.f32 %v314, 0.01
    %v331 = vmul.f32 %v315, 0.01
    %v332 = vmul.f32 %v316, 0.01
    %v333 = vmul.f32 %v317, 0.01
    %v334 = vmul.f32 %v318, 0.01
    %v335 = vmul.f32 %v319, 0.01
    %v336 = vmul.f32 %v320, 0.01
    %v337 = vmax.f32 %v305, %v321
    %v338 = vmax.f32 %v306, %v322
    %v339 = vmax.f32 %v307, %v323
    %v340 = vmax.f32 %v308, %v324
    %v341 = vmax.f32 %v309, %v325
    %v342 = vmax.f32 %v310, %v326
    %v343 = vmax.f32 %v311, %v327
    %v344 = vmax.f32 %v312, %v328
    %v345 = vmax.f32 %v313, %v329
    %v346 = vmax.f32 %v314, %v330
    %v347 = vmax.f32 %v315, %v331
    %v348 = vmax.f32 %v316, %v332
    %v349 = vmax.f32 %v317, %v333
    %v350 = vmax.f32 %v318, %v334
    %v351 = vmax.f32 %v319, %v335
    %v352 = vmax.f32 %v320, %v336
    %s353 = smul.u32 0, 128
    %v354 = vlaneseq
    %v355 = vshrl.u32 %v354, 7
    %v356 = vadd.s32 %v355, 8
    %v357 = vadd.s32 %v355, 16
    %v358 = vadd.s32 %v355, 24
    %v359 = vadd.s32 %v355, 32
    %v360 = vadd.s32 %v355, 40
    %v361 = vadd.s32 %v355, 48
    %v362 = vadd.s32 %v355, 56
    %v363 = vadd.s32 %v355, 64
    %v364 = vadd.s32 %v355, 72
    %v365 = vadd.s32 %v355, 80
    %v366 = vadd.s32 %v355, 88
    %v367 = vadd.s32 %v355, 96
    %v368 = vadd.s32 %v355, 104
    %v369 = vadd.s32 %v355, 112
    %v370 = vadd.s32 %v355, 120
    %v371 = vstv %s353
    %v372 = vadd.s32 %v371, %v355
    %v373 = vadd.s32 %v371, %v356
    %v374 = vadd.s32 %v371, %v357
    %v375 = vadd.s32 %v371, %v358
    %v376 = vadd.s32 %v371, %v359
    %v377 = vadd.s32 %v371, %v360
    %v378 = vadd.s32 %v371, %v361
    %v379 = vadd.s32 %v371, %v362
    %v380 = vadd.s32 %v371, %v363
    %v381 = vadd.s32 %v371, %v364
    %v382 = vadd.s32 %v371, %v365
    %v383 = vadd.s32 %v371, %v366
    %v384 = vadd.s32 %v371, %v367
    %v385 = vadd.s32 %v371, %v368
    %v386 = vadd.s32 %v371, %v369
    %v387 = vadd.s32 %v371, %v370
    %vm388 = vcmp.lt.s32.totalorder %v372, 8
    %vm389 = vcmp.lt.s32.totalorder %v373, 8
    %vm390 = vcmp.lt.s32.totalorder %v374, 8
    %vm391 = vcmp.lt.s32.totalorder %v375, 8
    %vm392 = vcmp.lt.s32.totalorder %v376, 8
    %vm393 = vcmp.lt.s32.totalorder %v377, 8
    %vm394 = vcmp.lt.s32.totalorder %v378, 8
    %vm395 = vcmp.lt.s32.totalorder %v379, 8
    %vm396 = vcmp.lt.s32.totalorder %v380, 8
    %vm397 = vcmp.lt.s32.totalorder %v381, 8
    %vm398 = vcmp.lt.s32.totalorder %v382, 8
    %vm399 = vcmp.lt.s32.totalorder %v383, 8
    %vm400 = vcmp.lt.s32.totalorder %v384, 8
    %vm401 = vcmp.lt.s32.totalorder %v385, 8
    %vm402 = vcmp.lt.s32.totalorder %v386, 8
    %vm403 = vcmp.lt.s32.totalorder %v387, 8
    %v404 = vsel %vm388, 1, 0
    %v405 = vsel %vm389, 1, 0
    %v406 = vsel %vm390, 1, 0
    %v407 = vsel %vm391, 1, 0
    %v408 = vsel %vm392, 1, 0
    %v409 = vsel %vm393, 1, 0
    %v410 = vsel %vm394, 1, 0
    %v411 = vsel %vm395, 1, 0
    %v412 = vsel %vm396, 1, 0
    %v413 = vsel %vm397, 1, 0
    %v414 = vsel %vm398, 1, 0
    %v415 = vsel %vm399, 1, 0
    %v416 = vsel %vm400, 1, 0
    %v417 = vsel %vm401, 1, 0
    %v418 = vsel %vm402, 1, 0
    %v419 = vsel %vm403, 1, 0
    %vm420 = vcmp.eq.s32.totalorder %v404, 1
    %vm421 = vcmp.eq.s32.totalorder %v405, 1
    %vm422 = vcmp.eq.s32.totalorder %v406, 1
    %vm423 = vcmp.eq.s32.totalorder %v407, 1
    %vm424 = vcmp.eq.s32.totalorder %v408, 1
    %vm425 = vcmp.eq.s32.totalorder %v409, 1
    %vm426 = vcmp.eq.s32.totalorder %v410, 1
    %vm427 = vcmp.eq.s32.totalorder %v411, 1
    %vm428 = vcmp.eq.s32.totalorder %v412, 1
    %vm429 = vcmp.eq.s32.totalorder %v413, 1
    %vm430 = vcmp.eq.s32.totalorder %v414, 1
    %vm431 = vcmp.eq.s32.totalorder %v415, 1
    %vm432 = vcmp.eq.s32.totalorder %v416, 1
    %vm433 = vcmp.eq.s32.totalorder %v417, 1
    %vm434 = vcmp.eq.s32.totalorder %v418, 1
    %vm435 = vcmp.eq.s32.totalorder %v419, 1
    %v436 = vsel %vm420, %v337, 0.0
    %v437 = vsel %vm421, %v338, 0.0
    %v438 = vsel %vm422, %v339, 0.0
    %v439 = vsel %vm423, %v340, 0.0
    %v440 = vsel %vm424, %v341, 0.0
    %v441 = vsel %vm425, %v342, 0.0
    %v442 = vsel %vm426, %v343, 0.0
    %v443 = vsel %vm427, %v344, 0.0
    %v444 = vsel %vm428, %v345, 0.0
    %v445 = vsel %vm429, %v346, 0.0
    %v446 = vsel %vm430, %v347, 0.0
    %v447 = vsel %vm431, %v348, 0.0
    %v448 = vsel %vm432, %v349, 0.0
    %v449 = vsel %vm433, %v350, 0.0
    %v450 = vsel %vm434, %v351, 0.0
    %v451 = vsel %vm435, %v352, 0.0
    %v452 = vadd.f32 %v436, %v437
    %v453 = vadd.f32 %v452, %v438
    %v454 = vadd.f32 %v453, %v439
    %v455 = vadd.f32 %v454, %v440
    %v456 = vadd.f32 %v455, %v441
    %v457 = vadd.f32 %v456, %v442
    %v458 = vadd.f32 %v457, %v443
    %v459 = vadd.f32 %v458, %v444
    %v460 = vadd.f32 %v459, %v445
    %v461 = vadd.f32 %v460, %v446
    %v462 = vadd.f32 %v461, %v447
    %v463 = vadd.f32 %v462, %v448
    %v464 = vadd.f32 %v463, %v449
    %v465 = vadd.f32 %v464, %v450
    %v466 = vadd.f32 %v465, %v451
    %v467 = vrot.slane %v466, 4
    %v468 = vadd.f32 %v466, %v467
    %v469 = vrot.slane %v468, 2
    %v470 = vadd.f32 %v468, %v469
    %v471 = vrot.slane %v470, 1
    %v472 = vadd.f32 %v470, %v471
    %473 = vst [vmem:[#allocation8] sm:$0x1] %v472
    %v474 = vld [vmem:[%s2] sm:$0x1]
    %v475 = vpack.c.bf16 %v437, %v436
    %v476 = vpack.c.bf16 %v439, %v438
    %v477 = vpack.c.bf16 %v441, %v440
    %v478 = vpack.c.bf16 %v443, %v442
    %v479 = vpack.c.bf16 %v445, %v444
    %v480 = vpack.c.bf16 %v447, %v446
    %v481 = vpack.c.bf16 %v449, %v448
    %v482 = vpack.c.bf16 %v451, %v450
    %483 = vmatprep.subr.bf16.mxu0 0
    %484 = vmatpush1.bf16.xpose.msra.mxu0 %v475
    %485 = vmatprep.subr.bf16.mxu0 0
    %486 = vmatpush1.bf16.xpose.msra.mxu0 %v476
    %487 = vmatprep.subr.bf16.mxu0 0
    %488 = vmatpush1.bf16.xpose.msra.mxu0 %v477
    %489 = vmatprep.subr.bf16.mxu0 0
    %490 = vmatpush1.bf16.xpose.msra.mxu0 %v478
    %491 = vmatprep.subr.bf16.mxu0 0
    %492 = vmatpush1.bf16.xpose.msra.mxu0 %v479
    %493 = vmatprep.subr.bf16.mxu0 0
    %494 = vmatpush1.bf16.xpose.msra.mxu0 %v480
    %495 = vmatprep.subr.bf16.mxu0 0
    %496 = vmatpush1.bf16.xpose.msra.mxu0 %v481
    %497 = vmatprep.subr.bf16.mxu0 0
    %498 = vmatpush1.bf16.xpose.msra.mxu0 %v482
    %499 = vmatprep.subr.bf16.mxu0 0
    %500 = vmatpush1.bf16.xpose.msra.mxu0 0
    %501 = vmatprep.subr.bf16.mxu0 0
    %502 = vmatpush1.bf16.xpose.msra.mxu0 0
    %503 = vmatprep.subr.bf16.mxu0 0
    %504 = vmatpush1.bf16.xpose.msra.mxu0 0
    %505 = vmatprep.subr.bf16.mxu0 0
    %506 = vmatpush1.bf16.xpose.msra.mxu0 0
    %507 = vmatprep.subr.bf16.mxu0 0
    %508 = vmatpush1.bf16.xpose.msra.mxu0 0
    %509 = vmatprep.subr.bf16.mxu0 0
    %510 = vmatpush1.bf16.xpose.msra.mxu0 0
    %511 = vmatprep.subr.bf16.mxu0 0
    %512 = vmatpush1.bf16.xpose.msra.mxu0 0
    %513 = vmatprep.subr.bf16.mxu0 0
    %514 = vmatpush1.bf16.xpose.msra.mxu0 0
    %515 = vmatprep.mubr.bf16.mxu0 0
    %516 = vmatmul.mubr.bf16.gmra.mrb[0].mxu0 %v474
    %v517 = vpop.f32.mrb[0].mxu0
    %v518 = vadd.f32 0.0, %v517
    %v519 = vpop.f32.mrb[0].mxu0
    %v520 = vpop.f32.mrb[0].mxu0
    %v521 = vpop.f32.mrb[0].mxu0
    %522 = vdwg.mxu0
    %v523 = vmul.f32 %v518, 0.01
    %v524 = vmax.f32 %v518, %v523
    %525 = vst [vmem:[#allocation7] sm:$0x1] %v524
    // Predicated region
    $region22: #{tpu_custom_call.1} parent=1 // pred_check
      _
    $region23: #{tpu_custom_call.1} parent=1 // pred_check_branch
      %527 = sbr.rel (0) target = $region25
    $region24: #{tpu_custom_call.1} parent=1 // pred_region
      %s529 = ssub.s32 16, 16
      %530 = vsyncadd [#allocation4], %s529
      %s532 = sshll.u32 [#allocation7], 4
      %s533 = int_to_ptr.vmem [resolvable:$true] %s532
      %535 = dma.vmem_to_hbm [thread:$0]  %s533, 16, %s3, [#allocation4]
    $region25: #{tpu_custom_call.1} parent=1 // pred_fallthru
      _
    // Predicated region
    $region26: #{tpu_custom_call.1} parent=1 // pred_check
      _
    $region27: #{tpu_custom_call.1} parent=1 // pred_check_branch
      %537 = sbr.rel (0) target = $region29
    $region28: #{tpu_custom_call.1} parent=1 // pred_region
      %s539 = ssub.s32 16, 16
      %540 = vsyncadd [#allocation9], %s539
      %s542 = sshll.u32 [#allocation8], 4
      %s543 = int_to_ptr.vmem [resolvable:$true] %s542
      %545 = dma.vmem_to_hbm [thread:$0]  %s543, 16, %s4, [#allocation9]
    $region29: #{tpu_custom_call.1} parent=1 // pred_fallthru
      _
    // Predicated region
    $region30: #{tpu_custom_call.1} parent=1 // pred_check
      _
    $region31: #{tpu_custom_call.1} parent=1 // pred_check_branch
      %547 = sbr.rel (0) target = $region33
    $region32: #{tpu_custom_call.1} parent=1 // pred_region
      %548 = dma.done [#allocation4], 16
    $region33: #{tpu_custom_call.1} parent=1 // pred_fallthru
      _
    // Predicated region
    $region34: #{tpu_custom_call.1} parent=1 // pred_check
      _
    $region35: #{tpu_custom_call.1} parent=1 // pred_check_branch
      %550 = sbr.rel (0) target = $region37
    $region36: #{tpu_custom_call.1} parent=1 // pred_region
      %551 = dma.done [#allocation9], 16
    $region37: #{tpu_custom_call.1} parent=1 // pred_fallthru
      _
    %552 = vsyncpa [#allocation3], 1
    %553 = vsyncpa [#allocation6], 1
    %554 = vsyncpa [#allocation4], 1
    %555 = vsyncpa [#allocation9], 1

</llo_original>
